<compile_context>
chip_gen: v6e
topology: v6e:2x2x1
jax: 0.10.0
libtpu: 0.0.40
codegen_flags: <defaults>
</compile_context>

<pallas_src>
import functools

import numpy as np

import jax
import jax.numpy as jnp
from jax import lax
from jax.experimental import pallas as pl
from jax.experimental.pallas import tpu as pltpu


# ----------------------------------------------------------------------------
# Fused Pallas kernel: conv1 + ReLU + conv2 (+ReLU) + maxpool + activation
# ----------------------------------------------------------------------------
def _fused_masking_kernel(x_ref, w1_ref, b1_ref, w2_ref, b2_ref, mask_ref,
                          o_ref, x2_scr, x2col_scr, pool_scr, *,
                          Wp, L, L1, TB, final_relu, max_pool, sigmoid):
    """One grid step = TB images, entirely in VMEM.

    x_ref    : (1, 9*Cin, TB*L) bf16  wrapper-built conv1 im2col (lane = pixel)
    w1_ref   : (Cout, 9*Cin)    bf16  per-tap transposed conv1 weights
    w2_ref   : (Cout, 9*Cout)   bf16
    b1/b2    : (Cout, 1) f32
    mask_ref : (1, TB*L) f32    zeros the horizontal pad columns of conv1 output
    o_ref    : (1, Cout, TB*L) f32    full per-position map (wrapper slices it)
    x2_scr   : (Cout, L1)       bf16  zero-extended per-image conv2 input
    x2col_scr: (9*Cout, TB*L)   bf16  conv2 im2col operand
    pool_scr : (Cout, TB*L + Wp + 1) f32  shifted-view buffer for 2x2 max-pool
    """
    Cout = w1_ref.shape[0]
    TBL = TB * L
    pad_lo = Wp + 1
    offs = [dy * Wp + dx for dy in range(3) for dx in range(3)]

    # ---- conv1: ONE MXU matmul (K = 9*Cin) over the whole batch tile ----
    acc1 = jnp.dot(w1_ref[...], x_ref[0],
                   preferred_element_type=jnp.float32)          # (Cout, TB*L)
    # bias + ReLU; zero pad columns (they become conv2's SAME padding)
    y1 = (jnp.maximum(acc1 + b1_ref[...], 0.0)
          * mask_ref[...]).astype(jnp.bfloat16)

    # ---- build conv2's im2col operand in VMEM, one image at a time ----
    # Only the pad strips of x2_scr ever need zeros; zero just those (cheap),
    # every step (NOT under pl.when(pid==0): scratch is per-core on v7x).
    x2_scr[:, 0:pad_lo] = jnp.zeros((Cout, pad_lo), jnp.bfloat16)
    x2_scr[:, pad_lo + L:L1] = jnp.zeros((Cout, L1 - pad_lo - L), jnp.bfloat16)
    for b in range(TB):
        x2_scr[:, pad_lo:pad_lo + L] = y1[:, b * L:(b + 1) * L]
        for t, off in enumerate(offs):
            x2col_scr[t * Cout:(t + 1) * Cout, b * L:(b + 1) * L] = \
                x2_scr[:, off:off + L]

    # ---- conv2: ONE MXU matmul (K = 9*Cout) ----
    acc2 = jnp.dot(w2_ref[...], x2col_scr[...],
                   preferred_element_type=jnp.float32) + b2_ref[...]
    if final_relu:
        acc2 = jnp.maximum(acc2, 0.0)

    # ---- 2x2 max-pool via shifted f32 slice loads + max (exact, no sel) ----
    if max_pool:
        pool_scr[:, TBL:TBL + Wp + 1] = jnp.zeros((Cout, Wp + 1), jnp.float32)
        pool_scr[:, 0:TBL] = acc2
        p01 = jnp.maximum(acc2, pool_scr[:, 1:1 + TBL])
        p23 = jnp.maximum(pool_scr[:, Wp:Wp + TBL],
                          pool_scr[:, Wp + 1:Wp + 1 + TBL])
        out = jnp.maximum(p01, p23)
    else:
        out = acc2

    if sigmoid:
        out = jax.nn.sigmoid(out)

    # Lane-dense full-map store; the wrapper strided-slices the valid / pooled
    # pixels out (pure layout plumbing).
    o_ref[0] = out.astype(o_ref.dtype)


# ----------------------------------------------------------------------------
# Parameter setup and forward wrapper
# ----------------------------------------------------------------------------
def init_params(key, inplanes, channels):
    """Deterministic synthetic weights (HWIO layout) for the two convs."""
    k1, k2 = jax.random.split(key, 2)
    w1 = jax.random.normal(k1, (3, 3, inplanes, channels), jnp.float32) * 0.1
    b1 = jnp.linspace(-0.05, 0.05, channels, dtype=jnp.float32)
    w2 = jax.random.normal(k2, (3, 3, channels, channels), jnp.float32) * 0.1
    b2 = jnp.linspace(0.05, -0.05, channels, dtype=jnp.float32)
    return {"w1": w1, "b1": b1, "w2": w2, "b2": b2}


def _pick_batch_tile(batch, per_tile_bytes, vmem_budget=6 << 20):
    """Largest divisor of `batch` that fits the VMEM budget while keeping
    >= 2 grid steps (so both v7x TensorCores get work; on v5e/v6e so the
    x_col DMA still pipelines against compute)."""
    tb = 1
    for cand in range(2, batch + 1):
        if batch % cand:
            continue
        if batch // cand < 2:
            break
        if cand * per_tile_bytes > vmem_budget:
            break
        tb = cand
    return tb


def multimodule_masking_forward(params, x_nchw, *, final_relu=True,
                                activation="sigmoid", max_pool=True):
    """x_nchw: (B, Cin, H, W) f32 -> mask (B, C, H//2, W//2) (or (B,C,H,W))."""
    if activation not in ("sigmoid", "softmax", "linear"):
        raise ValueError("Invalid Activation Function.")
    B, Cin, H, W = x_nchw.shape
    Cout = params["w1"].shape[-1]
    Hp, Wp = H + 2, W + 2
    L = H * Wp                 # flattened (padded-width) pixels per image
    L1 = Hp * Wp + 2           # + full top/bottom pad rows and +/-1 extension
    offs = [dy * Wp + dx for dy in range(3) for dx in range(3)]

    # --- conv1 im2col built by XLA (~2*9*Cin*L bytes/image, negligible) -----
    xp = jnp.pad(x_nchw, ((0, 0), (0, 0), (1, 1), (1, 1)))           # (B,Cin,Hp,Wp)
    x_ext = jnp.pad(xp.reshape(B, Cin, Hp * Wp),
                    ((0, 0), (0, 0), (1, 1))).astype(jnp.bfloat16)   # (B,Cin,L1)
    x_col = jnp.concatenate([x_ext[:, :, off:off + L] for off in offs],
                            axis=1)                                  # (B,9*Cin,L)

    # --- batch tiling: TB images per grid step, images packed along lanes ---
    per_img_bytes = (9 * Cin * L + 9 * Cout * L) * 2 + Cout * L * 4
    TB = _pick_batch_tile(B, 2 * per_img_bytes)
    G = B // TB
    TBL = TB * L
    x_col = (x_col.reshape(G, TB, 9 * Cin, L)
                  .transpose(0, 2, 1, 3)
                  .reshape(G, 9 * Cin, TBL))

    # Per-tap transposed weights: w_t[o, t*Ci + c] = w[dy, dx, c, o]
    w1t = params["w1"].reshape(9 * Cin, Cout).T.astype(jnp.bfloat16)
    w2t = params["w2"].reshape(9 * Cout, Cout).T.astype(jnp.bfloat16)
    b1 = params["b1"].astype(jnp.float32).reshape(Cout, 1)
    b2 = params["b2"].astype(jnp.float32).reshape(Cout, 1)

    # Mask for the horizontal pad columns of the flattened conv1 output.
    col = np.arange(L) % Wp
    mask1 = ((col >= 1) & (col <= W)).astype(np.float32)
    mask = jnp.asarray(np.tile(mask1, TB)[None, :])                  # (1, TB*L)

    kernel = functools.partial(
        _fused_masking_kernel, Wp=Wp, L=L, L1=L1, TB=TB,
        final_relu=final_relu, max_pool=max_pool,
        sigmoid=(activation == "sigmoid"))

    # TODO(synk): for very large H*W the whole-image-per-step map no longer
    # fits VMEM; tile spatially with a 1-px halo instead of batching images.
    out_flat = pl.pallas_call(
        kernel,
        out_shape=jax.ShapeDtypeStruct((G, Cout, TBL), jnp.float32),
        grid_spec=pltpu.PrefetchScalarGridSpec(
            num_scalar_prefetch=0,
            grid=(G,),
            in_specs=[
                pl.BlockSpec((1, 9 * Cin, TBL), lambda g: (g, 0, 0)),   # x_col
                pl.BlockSpec((Cout, 9 * Cin), lambda g: (0, 0)),        # w1t
                pl.BlockSpec((Cout, 1), lambda g: (0, 0)),              # b1
                pl.BlockSpec((Cout, 9 * Cout), lambda g: (0, 0)),       # w2t
                pl.BlockSpec((Cout, 1), lambda g: (0, 0)),              # b2
                pl.BlockSpec((1, TBL), lambda g: (0, 0)),               # mask
            ],
            out_specs=pl.BlockSpec((1, Cout, TBL), lambda g: (g, 0, 0)),
            scratch_shapes=[
                pltpu.VMEM((Cout, L1), jnp.bfloat16),           # x2_scr
                pltpu.VMEM((9 * Cout, TBL), jnp.bfloat16),      # x2col_scr
                pltpu.VMEM((Cout, TBL + Wp + 1), jnp.float32),  # pool_scr
            ]),
        compiler_params=pltpu.CompilerParams(
            dimension_semantics=("parallel",)),
    )(x_col, w1t, b1, w2t, b2, mask)

    # Un-pack batch tiles and view the lane axis as (H, Wp); then the valid /
    # pooled pixels are a strided slice (layout plumbing only, no compute).
    full = (out_flat.reshape(G, Cout, TB, L)
                    .transpose(0, 2, 1, 3)
                    .reshape(B, Cout, H, Wp))
    if max_pool:
        Ho, Wo = H // 2, W // 2
        out = full[:, :, 0:2 * Ho:2, 1:2 * Wo:2]                 # (B,C,Ho,Wo)
    else:
        out = full[:, :, :, 1:1 + W]                             # (B,C,H,W)

    if activation == "softmax":
        # nn.Softmax(dim=0): reduction across the batch axis — a cross-grid-step
        # reduction, applied outside the kernel.
        out = jax.nn.softmax(out, axis=0)
    return out


# ----------------------------------------------------------------------------
# Pure-JAX reference (mirrors the kernel's bf16-operand / f32-accum precision)
# ----------------------------------------------------------------------------
def _reference(params, x_nchw, *, final_relu, activation, max_pool):
    dn = ("NHWC", "HWIO", "NHWC")
    x = jnp.transpose(x_nchw, (0, 2, 3, 1)).astype(jnp.bfloat16)
    w1 = params["w1"].astype(jnp.bfloat16)
    w2 = params["w2"].astype(jnp.bfloat16)
    y = lax.conv_general_dilated(x, w1, (1, 1), "SAME", dimension_numbers=dn,
                                 preferred_element_type=jnp.float32)
    y = jnp.maximum(y + params["b1"], 0.0).astype(jnp.bfloat16)
    y = lax.conv_general_dilated(y, w2, (1, 1), "SAME", dimension_numbers=dn,
                                 preferred_element_type=jnp.float32)
    y = y + params["b2"]
    if final_relu:
        y = jnp.maximum(y, 0.0)
    if max_pool:
        y = lax.reduce_window(y, -jnp.inf, lax.max,
                              (1, 2, 2, 1), (1, 2, 2, 1), "VALID")
    y = jnp.transpose(y, (0, 3, 1, 2))
    if activation == "sigmoid":
        y = jax.nn.sigmoid(y)
    elif activation == "softmax":
        y = jax.nn.softmax(y, axis=0)
    return y


if __name__ == "__main__":
    B, Cin, H, W = 2, 4, 16, 16
    channels = 8
    final_relu, activation, max_pool = True, "sigmoid", True

    key = jax.random.PRNGKey(0)
    kx, kp = jax.random.split(key)
    x = jax.random.normal(kx, (B, Cin, H, W), jnp.float32)
    params = init_params(kp, Cin, channels)

    out = multimodule_masking_forward(
        params, x, final_relu=final_relu, activation=activation,
        max_pool=max_pool)
    out = jax.block_until_ready(out)

    ref = _reference(params, x, final_relu=final_relu, activation=activation,
                     max_pool=max_pool)
    assert out.shape == (B, channels, H // 2, W // 2), out.shape
    err = float(jnp.max(jnp.abs(out - ref)))
    assert err < 1e-3, f"mismatch vs reference: max abs err {err}"
    print("KERNEL_OK")
</pallas_src>

<mosaic_0001>
module attributes {stable_mosaic.version = 11 : i64} {
  func.func @_fused_masking_kernel(%arg0: i32, %arg1: memref<1x36x288xbf16, #tpu.memory_space<vmem>>, %arg2: memref<8x36xbf16, #tpu.memory_space<vmem>>, %arg3: memref<8x1xf32, #tpu.memory_space<vmem>>, %arg4: memref<8x72xbf16, #tpu.memory_space<vmem>>, %arg5: memref<8x1xf32, #tpu.memory_space<vmem>>, %arg6: memref<1x288xf32, #tpu.memory_space<vmem>>, %arg7: memref<1x8x288xf32, #tpu.memory_space<vmem>>, %arg8: memref<8x326xbf16, #tpu.memory_space<vmem>>, %arg9: memref<72x288xbf16, #tpu.memory_space<vmem>>, %arg10: memref<8x307xf32, #tpu.memory_space<vmem>>) attributes {dimension_semantics = [#tpu.dimension_semantics<parallel>], iteration_bounds = array<i64: 2>, scalar_prefetch = 0 : i64, scratch_operands = 3 : i64, tpu.core_type = #tpu.core_type<tc>, window_params = [{transform_indices = @transform_0, window_bounds = array<i64: 1, 36, 288>}, {pipeline_mode = #tpu.pipeline_mode<synchronous>, transform_indices = @transform_1, window_bounds = array<i64: 8, 36>}, {pipeline_mode = #tpu.pipeline_mode<synchronous>, transform_indices = @transform_2, window_bounds = array<i64: 8, 1>}, {pipeline_mode = #tpu.pipeline_mode<synchronous>, transform_indices = @transform_3, window_bounds = array<i64: 8, 72>}, {pipeline_mode = #tpu.pipeline_mode<synchronous>, transform_indices = @transform_4, window_bounds = array<i64: 8, 1>}, {pipeline_mode = #tpu.pipeline_mode<synchronous>, transform_indices = @transform_5, window_bounds = array<i64: 1, 288>}, {transform_indices = @transform_6, window_bounds = array<i64: 1, 8, 288>}]} {
    %c0 = arith.constant 0 : index
    %c0_0 = arith.constant 0 : index
    %0 = vector.load %arg2[%c0, %c0_0] : memref<8x36xbf16, #tpu.memory_space<vmem>>, vector<8x36xbf16>
    %c0_1 = arith.constant 0 : index
    %c0_2 = arith.constant 0 : index
    %c0_3 = arith.constant 0 : index
    %1 = vector.load %arg1[%c0_1, %c0_2, %c0_3] : memref<1x36x288xbf16, #tpu.memory_space<vmem>>, vector<1x36x288xbf16>
    %2 = vector.shape_cast %1 : vector<1x36x288xbf16> to vector<36x288xbf16>
    %cst = arith.constant dense<0.000000e+00> : vector<8x288xf32>
    %3 = tpu.matmul %0, %2, %cst {dimension_numbers = #tpu.dot_dimension_numbers<[1], [0], [0], [1], [0, 0, 1, 1], [], []>} : vector<8x36xbf16>, vector<36x288xbf16>, vector<8x288xf32> -> vector<8x288xf32>
    %c0_4 = arith.constant 0 : index
    %c0_5 = arith.constant 0 : index
    %4 = vector.load %arg3[%c0_4, %c0_5] : memref<8x1xf32, #tpu.memory_space<vmem>>, vector<8x1xf32>
    %5 = vector.broadcast %4 : vector<8x1xf32> to vector<8x288xf32>
    %6 = arith.addf %3, %5 : vector<8x288xf32>
    %cst_6 = arith.constant 0.000000e+00 : f32
    %7 = vector.broadcast %cst_6 : f32 to vector<8x288xf32>
    %8 = arith.maximumf %6, %7 : vector<8x288xf32>
    %c0_7 = arith.constant 0 : index
    %c0_8 = arith.constant 0 : index
    %9 = vector.load %arg6[%c0_7, %c0_8] : memref<1x288xf32, #tpu.memory_space<vmem>>, vector<1x288xf32>
    %10 = vector.broadcast %9 : vector<1x288xf32> to vector<8x288xf32>
    %11 = arith.mulf %8, %10 : vector<8x288xf32>
    %12 = arith.truncf %11 : vector<8x288xf32> to vector<8x288xbf16>
    %cst_9 = arith.constant 0.000000e+00 : bf16
    %13 = vector.broadcast %cst_9 : bf16 to vector<8x19xbf16>
    %c0_10 = arith.constant 0 : index
    %c0_11 = arith.constant 0 : index
    %14 = vector.load %arg8[%c0_10, %c0_11] : memref<8x326xbf16, #tpu.memory_space<vmem>>, vector<8x19xbf16>
    tpu.vector_store %arg8[%c0_10, %c0_11], %13 {strides = array<i32>} : memref<8x326xbf16, #tpu.memory_space<vmem>>, vector<8x19xbf16>,
    %cst_12 = arith.constant 0.000000e+00 : bf16
    %15 = vector.broadcast %cst_12 : bf16 to vector<8x19xbf16>
    %c0_13 = arith.constant 0 : index
    %c307 = arith.constant 307 : index
    %16 = vector.load %arg8[%c0_13, %c307] : memref<8x326xbf16, #tpu.memory_space<vmem>>, vector<8x19xbf16>
    tpu.vector_store %arg8[%c0_13, %c307], %15 {strides = array<i32>} : memref<8x326xbf16, #tpu.memory_space<vmem>>, vector<8x19xbf16>,
    %c0_14 = arith.constant 0 : index
    %c19 = arith.constant 19 : index
    %17 = vector.load %arg8[%c0_14, %c19] : memref<8x326xbf16, #tpu.memory_space<vmem>>, vector<8x288xbf16>
    tpu.vector_store %arg8[%c0_14, %c19], %12 {strides = array<i32>} : memref<8x326xbf16, #tpu.memory_space<vmem>>, vector<8x288xbf16>,
    %c0_15 = arith.constant 0 : index
    %c0_16 = arith.constant 0 : index
    %18 = vector.load %arg8[%c0_15, %c0_16] : memref<8x326xbf16, #tpu.memory_space<vmem>>, vector<8x288xbf16>
    %c0_17 = arith.constant 0 : index
    %c0_18 = arith.constant 0 : index
    %19 = vector.load %arg9[%c0_17, %c0_18] : memref<72x288xbf16, #tpu.memory_space<vmem>>, vector<8x288xbf16>
    tpu.vector_store %arg9[%c0_17, %c0_18], %18 {strides = array<i32>} : memref<72x288xbf16, #tpu.memory_space<vmem>>, vector<8x288xbf16>,
    %c0_19 = arith.constant 0 : index
    %c1 = arith.constant 1 : index
    %20 = vector.load %arg8[%c0_19, %c1] : memref<8x326xbf16, #tpu.memory_space<vmem>>, vector<8x288xbf16>
    %c8 = arith.constant 8 : index
    %c0_20 = arith.constant 0 : index
    %21 = vector.load %arg9[%c8, %c0_20] : memref<72x288xbf16, #tpu.memory_space<vmem>>, vector<8x288xbf16>
    tpu.vector_store %arg9[%c8, %c0_20], %20 {strides = array<i32>} : memref<72x288xbf16, #tpu.memory_space<vmem>>, vector<8x288xbf16>,
    %c0_21 = arith.constant 0 : index
    %c2 = arith.constant 2 : index
    %22 = vector.load %arg8[%c0_21, %c2] : memref<8x326xbf16, #tpu.memory_space<vmem>>, vector<8x288xbf16>
    %c16 = arith.constant 16 : index
    %c0_22 = arith.constant 0 : index
    %23 = vector.load %arg9[%c16, %c0_22] : memref<72x288xbf16, #tpu.memory_space<vmem>>, vector<8x288xbf16>
    tpu.vector_store %arg9[%c16, %c0_22], %22 {strides = array<i32>} : memref<72x288xbf16, #tpu.memory_space<vmem>>, vector<8x288xbf16>,
    %c0_23 = arith.constant 0 : index
    %c18 = arith.constant 18 : index
    %24 = vector.load %arg8[%c0_23, %c18] : memref<8x326xbf16, #tpu.memory_space<vmem>>, vector<8x288xbf16>
    %c24 = arith.constant 24 : index
    %c0_24 = arith.constant 0 : index
    %25 = vector.load %arg9[%c24, %c0_24] : memref<72x288xbf16, #tpu.memory_space<vmem>>, vector<8x288xbf16>
    tpu.vector_store %arg9[%c24, %c0_24], %24 {strides = array<i32>} : memref<72x288xbf16, #tpu.memory_space<vmem>>, vector<8x288xbf16>,
    %c0_25 = arith.constant 0 : index
    %c19_26 = arith.constant 19 : index
    %26 = vector.load %arg8[%c0_25, %c19_26] : memref<8x326xbf16, #tpu.memory_space<vmem>>, vector<8x288xbf16>
    %c32 = arith.constant 32 : index
    %c0_27 = arith.constant 0 : index
    %27 = vector.load %arg9[%c32, %c0_27] : memref<72x288xbf16, #tpu.memory_space<vmem>>, vector<8x288xbf16>
    tpu.vector_store %arg9[%c32, %c0_27], %26 {strides = array<i32>} : memref<72x288xbf16, #tpu.memory_space<vmem>>, vector<8x288xbf16>,
    %c0_28 = arith.constant 0 : index
    %c20 = arith.constant 20 : index
    %28 = vector.load %arg8[%c0_28, %c20] : memref<8x326xbf16, #tpu.memory_space<vmem>>, vector<8x288xbf16>
    %c40 = arith.constant 40 : index
    %c0_29 = arith.constant 0 : index
    %29 = vector.load %arg9[%c40, %c0_29] : memref<72x288xbf16, #tpu.memory_space<vmem>>, vector<8x288xbf16>
    tpu.vector_store %arg9[%c40, %c0_29], %28 {strides = array<i32>} : memref<72x288xbf16, #tpu.memory_space<vmem>>, vector<8x288xbf16>,
    %c0_30 = arith.constant 0 : index
    %c36 = arith.constant 36 : index
    %30 = vector.load %arg8[%c0_30, %c36] : memref<8x326xbf16, #tpu.memory_space<vmem>>, vector<8x288xbf16>
    %c48 = arith.constant 48 : index
    %c0_31 = arith.constant 0 : index
    %31 = vector.load %arg9[%c48, %c0_31] : memref<72x288xbf16, #tpu.memory_space<vmem>>, vector<8x288xbf16>
    tpu.vector_store %arg9[%c48, %c0_31], %30 {strides = array<i32>} : memref<72x288xbf16, #tpu.memory_space<vmem>>, vector<8x288xbf16>,
    %c0_32 = arith.constant 0 : index
    %c37 = arith.constant 37 : index
    %32 = vector.load %arg8[%c0_32, %c37] : memref<8x326xbf16, #tpu.memory_space<vmem>>, vector<8x288xbf16>
    %c56 = arith.constant 56 : index
    %c0_33 = arith.constant 0 : index
    %33 = vector.load %arg9[%c56, %c0_33] : memref<72x288xbf16, #tpu.memory_space<vmem>>, vector<8x288xbf16>
    tpu.vector_store %arg9[%c56, %c0_33], %32 {strides = array<i32>} : memref<72x288xbf16, #tpu.memory_space<vmem>>, vector<8x288xbf16>,
    %c0_34 = arith.constant 0 : index
    %c38 = arith.constant 38 : index
    %34 = vector.load %arg8[%c0_34, %c38] : memref<8x326xbf16, #tpu.memory_space<vmem>>, vector<8x288xbf16>
    %c64 = arith.constant 64 : index
    %c0_35 = arith.constant 0 : index
    %35 = vector.load %arg9[%c64, %c0_35] : memref<72x288xbf16, #tpu.memory_space<vmem>>, vector<8x288xbf16>
    tpu.vector_store %arg9[%c64, %c0_35], %34 {strides = array<i32>} : memref<72x288xbf16, #tpu.memory_space<vmem>>, vector<8x288xbf16>,
    %c0_36 = arith.constant 0 : index
    %c0_37 = arith.constant 0 : index
    %36 = vector.load %arg4[%c0_36, %c0_37] : memref<8x72xbf16, #tpu.memory_space<vmem>>, vector<8x72xbf16>
    %c0_38 = arith.constant 0 : index
    %c0_39 = arith.constant 0 : index
    %37 = vector.load %arg9[%c0_38, %c0_39] : memref<72x288xbf16, #tpu.memory_space<vmem>>, vector<72x288xbf16>
    %cst_40 = arith.constant dense<0.000000e+00> : vector<8x288xf32>
    %38 = tpu.matmul %36, %37, %cst_40 {dimension_numbers = #tpu.dot_dimension_numbers<[1], [0], [0], [1], [0, 0, 1, 1], [], []>} : vector<8x72xbf16>, vector<72x288xbf16>, vector<8x288xf32> -> vector<8x288xf32>
    %c0_41 = arith.constant 0 : index
    %c0_42 = arith.constant 0 : index
    %39 = vector.load %arg5[%c0_41, %c0_42] : memref<8x1xf32, #tpu.memory_space<vmem>>, vector<8x1xf32>
    %40 = vector.broadcast %39 : vector<8x1xf32> to vector<8x288xf32>
    %41 = arith.addf %38, %40 : vector<8x288xf32>
    %cst_43 = arith.constant 0.000000e+00 : f32
    %42 = vector.broadcast %cst_43 : f32 to vector<8x288xf32>
    %43 = arith.maximumf %41, %42 : vector<8x288xf32>
    %cst_44 = arith.constant 0.000000e+00 : f32
    %44 = vector.broadcast %cst_44 : f32 to vector<8x19xf32>
    %c0_45 = arith.constant 0 : index
    %c288 = arith.constant 288 : index
    %45 = vector.load %arg10[%c0_45, %c288] : memref<8x307xf32, #tpu.memory_space<vmem>>, vector<8x19xf32>
    tpu.vector_store %arg10[%c0_45, %c288], %44 {strides = array<i32>} : memref<8x307xf32, #tpu.memory_space<vmem>>, vector<8x19xf32>,
    %c0_46 = arith.constant 0 : index
    %c0_47 = arith.constant 0 : index
    %46 = vector.load %arg10[%c0_46, %c0_47] : memref<8x307xf32, #tpu.memory_space<vmem>>, vector<8x288xf32>
    tpu.vector_store %arg10[%c0_46, %c0_47], %43 {strides = array<i32>} : memref<8x307xf32, #tpu.memory_space<vmem>>, vector<8x288xf32>,
    %c0_48 = arith.constant 0 : index
    %c1_49 = arith.constant 1 : index
    %47 = vector.load %arg10[%c0_48, %c1_49] : memref<8x307xf32, #tpu.memory_space<vmem>>, vector<8x288xf32>
    %48 = arith.maximumf %43, %47 : vector<8x288xf32>
    %c0_50 = arith.constant 0 : index
    %c18_51 = arith.constant 18 : index
    %49 = vector.load %arg10[%c0_50, %c18_51] : memref<8x307xf32, #tpu.memory_space<vmem>>, vector<8x288xf32>
    %c0_52 = arith.constant 0 : index
    %c19_53 = arith.constant 19 : index
    %50 = vector.load %arg10[%c0_52, %c19_53] : memref<8x307xf32, #tpu.memory_space<vmem>>, vector<8x288xf32>
    %51 = arith.maximumf %49, %50 : vector<8x288xf32>
    %52 = arith.maximumf %48, %51 : vector<8x288xf32>
    %53 = arith.negf %52 : vector<8x288xf32>
    %54 = math.exp %53 : vector<8x288xf32>
    %cst_54 = arith.constant 1.000000e+00 : f32
    %55 = vector.broadcast %cst_54 : f32 to vector<8x288xf32>
    %56 = arith.addf %55, %54 : vector<8x288xf32>
    %57 = arith.divf %55, %56 : vector<8x288xf32>
    %c0_55 = arith.constant 0 : index
    %c0_56 = arith.constant 0 : index
    %c0_57 = arith.constant 0 : index
    %58 = vector.load %arg7[%c0_55, %c0_56, %c0_57] : memref<1x8x288xf32, #tpu.memory_space<vmem>>, vector<1x8x288xf32>
    %59 = vector.shape_cast %58 : vector<1x8x288xf32> to vector<8x288xf32>
    %60 = vector.shape_cast %57 : vector<8x288xf32> to vector<1x8x288xf32>
    tpu.vector_store %arg7[%c0_55, %c0_56, %c0_57], %60 {strides = array<i32>} : memref<1x8x288xf32, #tpu.memory_space<vmem>>, vector<1x8x288xf32>,
    return
  }
  func.func @transform_0(%arg0: i32) -> (i32, i32, i32) {
    %c0_i32 = arith.constant 0 : i32
    %c0_i32_0 = arith.constant 0 : i32
    %c0_i32_1 = arith.constant 0 : i32
    return %arg0, %c0_i32, %c0_i32_0 : i32, i32, i32
  }
  func.func @transform_1(%arg0: i32) -> (i32, i32) {
    %c0_i32 = arith.constant 0 : i32
    %c0_i32_0 = arith.constant 0 : i32
    %c0_i32_1 = arith.constant 0 : i32
    return %c0_i32, %c0_i32_0 : i32, i32
  }
  func.func @transform_2(%arg0: i32) -> (i32, i32) {
    %c0_i32 = arith.constant 0 : i32
    %c0_i32_0 = arith.constant 0 : i32
    %c0_i32_1 = arith.constant 0 : i32
    return %c0_i32, %c0_i32_0 : i32, i32
  }
  func.func @transform_3(%arg0: i32) -> (i32, i32) {
    %c0_i32 = arith.constant 0 : i32
    %c0_i32_0 = arith.constant 0 : i32
    %c0_i32_1 = arith.constant 0 : i32
    return %c0_i32, %c0_i32_0 : i32, i32
  }
  func.func @transform_4(%arg0: i32) -> (i32, i32) {
    %c0_i32 = arith.constant 0 : i32
    %c0_i32_0 = arith.constant 0 : i32
    %c0_i32_1 = arith.constant 0 : i32
    return %c0_i32, %c0_i32_0 : i32, i32
  }
  func.func @transform_5(%arg0: i32) -> (i32, i32) {
    %c0_i32 = arith.constant 0 : i32
    %c0_i32_0 = arith.constant 0 : i32
    %c0_i32_1 = arith.constant 0 : i32
    return %c0_i32, %c0_i32_0 : i32, i32
  }
  func.func @transform_6(%arg0: i32) -> (i32, i32, i32) {
    %c0_i32 = arith.constant 0 : i32
    %c0_i32_0 = arith.constant 0 : i32
    %c0_i32_1 = arith.constant 0 : i32
    return %arg0, %c0_i32, %c0_i32_0 : i32, i32, i32
  }
}

</mosaic_0001>

<llo_original>
// kernel: tpu_custom_call.1
$region0: #{tpu_custom_call.1}
  #allocation0 [shape = 'u32[]', space=smem, size = 0x4, offset = 0x4, fixed_abs, tag = 'smem constant byte address 0x4 - core index']
  #allocation1 [shape = 'u32[144,128]{1,0:T(1,128)}', space=vmem, size = 0x12000, scoped, tag = 'internal scratch']
  #allocation2 [shape = 'bf16[8,326]{1,0:T(8,128)(2,1)}', space=vmem, size = 0x1800, scoped, tag = 'scratch operand']
  #allocation3 [shape = 'bf16[72,288]{1,0:T(8,128)(2,1)}', space=vmem, size = 0xd800, scoped, tag = 'scratch operand']
  #allocation4 [shape = 'f32[8,307]{1,0:T(8,128)}', space=vmem, size = 0x3000, scoped, tag = 'scratch operand']
  %s0 = inlined_call_operand.vmem [shape: bf16[2,36,288], index: 0, kind: input, shape index: {}]
  %s1 = inlined_call_operand.vmem [shape: bf16[8,36], index: 1, kind: input, shape index: {}]
  %s2 = inlined_call_operand.vmem [shape: f32[8,1], index: 2, kind: input, shape index: {}]
  %s3 = inlined_call_operand.vmem [shape: bf16[8,72], index: 3, kind: input, shape index: {}]
  %s4 = inlined_call_operand.vmem [shape: f32[8,1], index: 4, kind: input, shape index: {}]
  %s5 = inlined_call_operand.vmem [shape: f32[1,288], index: 5, kind: input, shape index: {}]
  %s6 = inlined_call_operand.hbm [shape: f32[2,8,288], index: 6, kind: output, shape index: {}]
  %s7 = sld [smem:[#allocation0]]
  $region57: #{tpu_custom_call.1} parent=0
    _
  %s9 = ssub.s32 1, %s7
  %s10 = scalar_select 0, %s9, %s7
  $region1: #{tpu_custom_call.1} parent=0
    #allocation5 [shape = 'u8[24576]{0}', space=vmem, size = 0x6000, scoped, tag = 'output window, operand 0']
    #allocation6 [shape = 's32[2]{0}', space=sflag, size = 0x8, scoped, tag = 'scoped memory for tpu_custom_call.1']
    %11 = vsyncpa [#allocation6], 0
    %s12 = scalar_lea.sflag [#allocation6], 1
    %13 = vsyncpa %s12, 0
    loop: start=0, step=1, limit=4
    $region2: #{tpu_custom_call.1} parent=1 // loop_pre_header
      _
    $region3: #{tpu_custom_call.1} parent=1 // loop_header
      %s15 = sphi 0, %s19
      %p16 = scmp.ge.s32.totalorder %s15, 4
      %s25 = sphi 0, %s27
      %s28 = sphi 0, %s25
      %s29 = sphi 0, %s28
      %s45 = sphi 0, %s29
      %s49 = sphi 0, %s49
      %s51 = sphi 0, %s49
      %s52 = sphi 0, %s51
      %s66 = sphi 0, %s52
      %s70 = sphi 0, %s70
      %s72 = sphi 0, %s70
      %s73 = sphi 0, %s72
      %s87 = sphi 0, %s73
      %s91 = sphi 0, %s91
      %s93 = sphi 0, %s91
      %s94 = sphi 0, %s93
      %s108 = sphi 0, %s94
      %s112 = sphi 0, %s112
      %s114 = sphi 0, %s112
      %s115 = sphi 0, %s114
      %s129 = sphi 0, %s115
      %s133 = sphi 0, %s133
      %s135 = sphi 0, %s133
      %s136 = sphi 0, %s135
      %s150 = sphi 0, %s136
      %s156 = sphi 0, %s158
      %s159 = sphi 0, %s156
      %s160 = sphi 0, %s159
      %s176 = sphi 0, %s160
    $region4: #{tpu_custom_call.1} parent=1 // loop_header_branch
      %18 = sbr.rel (%p16) target = $region8
    $region5: #{tpu_custom_call.1} parent=1 // loop_body
      %s20 = ssub.s32 %s15, 1
      %s21 = ssub.s32 %s15, 2
      %s22 = sadd.s32 %s15, 1
      %s23 = ssub.s32 %s15, %s22
      %p24 = scmp.eq.s32.totalorder %s23, 0
      %s26 = sadd.s32 %s25, 1
      %s27 = scalar_select %p24, %s25, %s26
      %p30 = pneg %p24
      %p31 = scmp.eq.s32.totalorder %s15, 1
      %p32 = por %p30, %p31
      %p33 = scmp.ne.s32.totalorder %s25, %s28
      %p34 = scmp.eq.s32.totalorder %s15, 0
      %p35 = por %p33, %p34
      %p36 = scmp.ne.s32.totalorder %s25, %s28
      %p37 = scmp.eq.s32.totalorder %s20, 1
      %p38 = por %p36, %p37
      %p39 = scmp.ne.s32.totalorder %s28, %s29
      %p40 = scmp.eq.s32.totalorder %s20, 0
      %p41 = por %p39, %p40
      %p42 = scmp.ne.s32.totalorder %s28, %s29
      %p43 = scmp.eq.s32.totalorder %s21, 1
      %p44 = por %p42, %p43
      %p46 = scmp.ne.s32.totalorder %s29, %s45
      %p47 = scmp.eq.s32.totalorder %s21, 0
      %p48 = por %p46, %p47
      %s50 = sadd.s32 %s49, 1
      %p53 = scmp.eq.s32.totalorder %s15, 1
      %p54 = scmp.ne.s32.totalorder %s49, %s51
      %p55 = scmp.eq.s32.totalorder %s15, 0
      %p56 = por %p54, %p55
      %p57 = scmp.ne.s32.totalorder %s49, %s51
      %p58 = scmp.eq.s32.totalorder %s20, 1
      %p59 = por %p57, %p58
      %p60 = scmp.ne.s32.totalorder %s51, %s52
      %p61 = scmp.eq.s32.totalorder %s20, 0
      %p62 = por %p60, %p61
      %p63 = scmp.ne.s32.totalorder %s51, %s52
      %p64 = scmp.eq.s32.totalorder %s21, 1
      %p65 = por %p63, %p64
      %p67 = scmp.ne.s32.totalorder %s52, %s66
      %p68 = scmp.eq.s32.totalorder %s21, 0
      %p69 = por %p67, %p68
      %s71 = sadd.s32 %s70, 1
      %p74 = scmp.eq.s32.totalorder %s15, 1
      %p75 = scmp.ne.s32.totalorder %s70, %s72
      %p76 = scmp.eq.s32.totalorder %s15, 0
      %p77 = por %p75, %p76
      %p78 = scmp.ne.s32.totalorder %s70, %s72
      %p79 = scmp.eq.s32.totalorder %s20, 1
      %p80 = por %p78, %p79
      %p81 = scmp.ne.s32.totalorder %s72, %s73
      %p82 = scmp.eq.s32.totalorder %s20, 0
      %p83 = por %p81, %p82
      %p84 = scmp.ne.s32.totalorder %s72, %s73
      %p85 = scmp.eq.s32.totalorder %s21, 1
      %p86 = por %p84, %p85
      %p88 = scmp.ne.s32.totalorder %s73, %s87
      %p89 = scmp.eq.s32.totalorder %s21, 0
      %p90 = por %p88, %p89
      %s92 = sadd.s32 %s91, 1
      %p95 = scmp.eq.s32.totalorder %s15, 1
      %p96 = scmp.ne.s32.totalorder %s91, %s93
      %p97 = scmp.eq.s32.totalorder %s15, 0
      %p98 = por %p96, %p97
      %p99 = scmp.ne.s32.totalorder %s91, %s93
      %p100 = scmp.eq.s32.totalorder %s20, 1
      %p101 = por %p99, %p100
      %p102 = scmp.ne.s32.totalorder %s93, %s94
      %p103 = scmp.eq.s32.totalorder %s20, 0
      %p104 = por %p102, %p103
      %p105 = scmp.ne.s32.totalorder %s93, %s94
      %p106 = scmp.eq.s32.totalorder %s21, 1
      %p107 = por %p105, %p106
      %p109 = scmp.ne.s32.totalorder %s94, %s108
      %p110 = scmp.eq.s32.totalorder %s21, 0
      %p111 = por %p109, %p110
      %s113 = sadd.s32 %s112, 1
      %p116 = scmp.eq.s32.totalorder %s15, 1
      %p117 = scmp.ne.s32.totalorder %s112, %s114
      %p118 = scmp.eq.s32.totalorder %s15, 0
      %p119 = por %p117, %p118
      %p120 = scmp.ne.s32.totalorder %s112, %s114
      %p121 = scmp.eq.s32.totalorder %s20, 1
      %p122 = por %p120, %p121
      %p123 = scmp.ne.s32.totalorder %s114, %s115
      %p124 = scmp.eq.s32.totalorder %s20, 0
      %p125 = por %p123, %p124
      %p126 = scmp.ne.s32.totalorder %s114, %s115
      %p127 = scmp.eq.s32.totalorder %s21, 1
      %p128 = por %p126, %p127
      %p130 = scmp.ne.s32.totalorder %s115, %s129
      %p131 = scmp.eq.s32.totalorder %s21, 0
      %p132 = por %p130, %p131
      %s134 = sadd.s32 %s133, 1
      %p137 = scmp.eq.s32.totalorder %s15, 1
      %p138 = scmp.ne.s32.totalorder %s133, %s135
      %p139 = scmp.eq.s32.totalorder %s15, 0
      %p140 = por %p138, %p139
      %p141 = scmp.ne.s32.totalorder %s133, %s135
      %p142 = scmp.eq.s32.totalorder %s20, 1
      %p143 = por %p141, %p142
      %p144 = scmp.ne.s32.totalorder %s135, %s136
      %p145 = scmp.eq.s32.totalorder %s20, 0
      %p146 = por %p144, %p145
      %p147 = scmp.ne.s32.totalorder %s135, %s136
      %p148 = scmp.eq.s32.totalorder %s21, 1
      %p149 = por %p147, %p148
      %p151 = scmp.ne.s32.totalorder %s136, %s150
      %p152 = scmp.eq.s32.totalorder %s21, 0
      %p153 = por %p151, %p152
      %s154 = ssub.s32 %s15, %s22
      %p155 = scmp.eq.s32.totalorder %s154, 0
      %s157 = sadd.s32 %s156, 1
      %s158 = scalar_select %p155, %s156, %s157
      %p161 = pneg %p155
      %p162 = scmp.eq.s32.totalorder %s15, 1
      %p163 = por %p161, %p162
      %p164 = scmp.ne.s32.totalorder %s156, %s159
      %p165 = scmp.eq.s32.totalorder %s15, 0
      %p166 = por %p164, %p165
      %p167 = scmp.ne.s32.totalorder %s156, %s159
      %p168 = scmp.eq.s32.totalorder %s20, 1
      %p169 = por %p167, %p168
      %p170 = scmp.ne.s32.totalorder %s159, %s160
      %p171 = scmp.eq.s32.totalorder %s20, 0
      %p172 = por %p170, %p171
      %p173 = scmp.ne.s32.totalorder %s159, %s160
      %p174 = scmp.eq.s32.totalorder %s21, 1
      %p175 = por %p173, %p174
      %p177 = scmp.ne.s32.totalorder %s160, %s176
      %p178 = scmp.eq.s32.totalorder %s21, 0
      %p179 = por %p177, %p178
      %p180 = scmp.le.s32.totalorder 1, %s15
      %p181 = scmp.lt.s32.totalorder %s15, 3
      %p182 = pnand %p180, %p181
      %p183 = pneg %p182
      // Predicated region
      $region9: #{tpu_custom_call.1} parent=5 // pred_check
        _
      $region10: #{tpu_custom_call.1} parent=5 // pred_check_branch
        %185 = sbr.rel (%p182) target = $region12
      $region11: #{tpu_custom_call.1} parent=5 // pred_region
        %s186 = ssub.s32 %s15, 1
        // Predicated region
        $region13: #{tpu_custom_call.1} parent=11 // pred_check
          %p187 = pneg %p62
        $region14: #{tpu_custom_call.1} parent=11 // pred_check_branch
          %189 = sbr.rel (%p187) target = $region16
        $region15: #{tpu_custom_call.1} parent=11 // pred_region
          _
        $region16: #{tpu_custom_call.1} parent=11 // pred_fallthru
          _
        // Predicated region
        $region17: #{tpu_custom_call.1} parent=11 // pred_check
          %p190 = pneg %p83
        $region18: #{tpu_custom_call.1} parent=11 // pred_check_branch
          %192 = sbr.rel (%p190) target = $region20
        $region19: #{tpu_custom_call.1} parent=11 // pred_region
          _
        $region20: #{tpu_custom_call.1} parent=11 // pred_fallthru
          _
        // Predicated region
        $region21: #{tpu_custom_call.1} parent=11 // pred_check
          %p193 = pneg %p104
        $region22: #{tpu_custom_call.1} parent=11 // pred_check_branch
          %195 = sbr.rel (%p193) target = $region24
        $region23: #{tpu_custom_call.1} parent=11 // pred_region
          _
        $region24: #{tpu_custom_call.1} parent=11 // pred_fallthru
          _
        // Predicated region
        $region25: #{tpu_custom_call.1} parent=11 // pred_check
          %p196 = pneg %p125
        $region26: #{tpu_custom_call.1} parent=11 // pred_check_branch
          %198 = sbr.rel (%p196) target = $region28
        $region27: #{tpu_custom_call.1} parent=11 // pred_region
          _
        $region28: #{tpu_custom_call.1} parent=11 // pred_fallthru
          _
        // Predicated region
        $region29: #{tpu_custom_call.1} parent=11 // pred_check
          %p199 = pneg %p146
        $region30: #{tpu_custom_call.1} parent=11 // pred_check_branch
          %201 = sbr.rel (%p199) target = $region32
        $region31: #{tpu_custom_call.1} parent=11 // pred_region
          _
        $region32: #{tpu_custom_call.1} parent=11 // pred_fallthru
          _
      $region12: #{tpu_custom_call.1} parent=5 // pred_fallthru
        _
      %p202 = scmp.lt.s32.totalorder %s15, 2
      // Predicated region
      $region33: #{tpu_custom_call.1} parent=5 // pred_check
        %p203 = pneg %p202
      $region34: #{tpu_custom_call.1} parent=5 // pred_check_branch
        %205 = sbr.rel (%p203) target = $region36
      $region35: #{tpu_custom_call.1} parent=5 // pred_region
        // Predicated region
        $region37: #{tpu_custom_call.1} parent=35 // pred_check
          %p206 = pneg %p35
        $region38: #{tpu_custom_call.1} parent=35 // pred_check_branch
          %208 = sbr.rel (%p206) target = $region40
        $region39: #{tpu_custom_call.1} parent=35 // pred_region
          %p209 = scmp.lt.s32.totalorder %s15, 1
          %s210 = scalar_select %p209, %s15, 1
          %s211 = smul.addr %s210, 15
          %s212 = smul.addr %s211, 4
          %s213 = scalar_lea.vmem %s0, %s212
        $region40: #{tpu_custom_call.1} parent=35 // pred_fallthru
          _
      $region36: #{tpu_custom_call.1} parent=5 // pred_fallthru
        _
      %p214 = scmp.le.s32.totalorder 1, %s15
      %p215 = scmp.lt.s32.totalorder %s15, 3
      %p216 = pnand %p214, %p215
      %p217 = pneg %p216
      // Predicated region
      $region41: #{tpu_custom_call.1} parent=5 // pred_check
        _
      $region42: #{tpu_custom_call.1} parent=5 // pred_check_branch
        %219 = sbr.rel (%p216) target = $region44
      $region43: #{tpu_custom_call.1} parent=5 // pred_region
        %s220 = ssub.s32 %s15, 1
        %p221 = scmp.lt.s32.totalorder %s20, 1
        %s222 = scalar_select %p221, %s20, 1
        %s223 = smul.addr %s222, 15
        %s224 = smul.addr %s223, 4
        %s225 = scalar_lea.vmem %s0, %s224
        %p226 = pneg %p41
        %p227 = pneg %p38
        %p228 = pneg %p62
        %p229 = pneg %p59
        %p230 = pneg %p83
        %p231 = pneg %p80
        %p232 = pneg %p104
        %p233 = pneg %p101
        %p234 = pneg %p125
        %p235 = pneg %p122
        %p236 = pneg %p146
        %p237 = pneg %p143
        %p238 = pneg %p172
        %p239 = pneg %p169
        %s240 = sand.u32 %s159, 1
        %s241 = scalar_lea.sflag [#allocation6], %s240
        %s242 = sand.u32 %s159, 1
        %s243 = smul.addr %s242, 24
        %s244 = scalar_lea.vmem [#allocation5], %s243
        %p245 = scmp.lt.s32.totalorder %s20, 1
        %s246 = scalar_select %p245, %s20, 1
        %s247 = smul.addr %s246, 15
        %s248 = smul.addr %s247, 4
        %s249 = scalar_lea.vmem %s0, %s248
        %v251 = vld [vmem:[%s1] sm:$0xf]
        %v252 = vld [vmem:[%s249] sm:$0xff]
        %v253 = vld [vmem:[%s249 + $0x8] sm:$0xf]
        %v254 = vld [vmem:[%s249 + $0xc] sm:$0xff]
        %v255 = vld [vmem:[%s249 + $0x14] sm:$0xf]
        %v256 = vld [vmem:[%s249 + $0x18] sm:$0xff]
        %v257 = vld [vmem:[%s249 + $0x20] sm:$0xf]
        %v258 = vld [vmem:[%s249 + $0x24] sm:$0xff]
        %v259 = vld [vmem:[%s249 + $0x2c] sm:$0xf]
        %v260 = vld [vmem:[%s249 + $0x30] sm:$0x33]
        %v261 = vld [vmem:[%s249 + $0x38] sm:$0x3]
        %v262 = vld [vmem:[%s2] sm:$0xff]
        %264 = vset.pattern.permute.xlu0 0
        %265 = vperm.xlu0 %264, %v262
        %v266 = vpop.permute.xlu0 %265
        %v278 = vunpack.c.l.b16 %v252
        %v279 = vunpack.c.h.b16 %v252
        %v280 = vunpack.c.l.b16 %v253
        %v281 = vunpack.c.l.b16 %v254
        %v282 = vunpack.c.h.b16 %v254
        %v283 = vunpack.c.l.b16 %v255
        %v284 = vunpack.c.l.b16 %v256
        %v285 = vunpack.c.h.b16 %v256
        %v286 = vunpack.c.l.b16 %v257
        %v287 = vunpack.c.l.b16 %v258
        %v288 = vunpack.c.h.b16 %v258
        %v289 = vunpack.c.l.b16 %v259
        %v290 = vunpack.c.l.b16 %v260
        %v291 = vunpack.c.h.b16 %v260
        %v292 = vunpack.c.l.b16 %v261
        %v293 = vpack.c.b16 %v281, %v278
        %v294 = vpack.c.b16 %v282, %v279
        %v295 = vpack.c.b16 %v283, %v280
        %v296 = vpack.c.b16 %v287, %v284
        %v297 = vpack.c.b16 %v288, %v285
        %v298 = vpack.c.b16 %v289, %v286
        %v299 = vpack.c.b16 %v290, %v290
        %v300 = vpack.c.b16 %v291, %v291
        %v301 = vpack.c.b16 %v292, %v292
        %vm308 = vcmask 293888
        %v310 = vsel %vm308, %v251, 0
        %vm312 = vcmask 1041408
        %v314 = vsel %vm312, %v299, 0
        %v317 = vsel %vm312, %v300, 0
        %v320 = vsel %vm312, %v301, 0
        %322 = vmatprep.subr.bf16.mxu0 0
        %323 = vmatpush1.bf16.msra.mxu0 0
        %324 = vmatprep.subr.bf16.mxu0 0
        %325 = vmatpush1.bf16.msra.mxu0 0
        %326 = vmatprep.subr.bf16.mxu0 0
        %327 = vmatpush1.bf16.msra.mxu0 0
        %328 = vmatprep.subr.bf16.mxu0 0
        %329 = vmatpush1.bf16.msra.mxu0 0
        %330 = vmatprep.subr.bf16.mxu0 0
        %331 = vmatpush1.bf16.msra.mxu0 0
        %332 = vmatprep.subr.bf16.mxu0 %v317
        %333 = vmatpush1.bf16.msra.mxu0 %v314
        %334 = vmatprep.subr.bf16.mxu0 %v297
        %335 = vmatpush1.bf16.msra.mxu0 %v296
        %336 = vmatprep.subr.bf16.mxu0 %v294
        %337 = vmatpush1.bf16.msra.mxu0 %v293
        %338 = vmatprep.subr.bf16.mxu0 0
        %339 = vmatpush2.bf16.msra.mxu0 0
        %340 = vmatprep.subr.bf16.mxu0 0
        %341 = vmatpush2.bf16.msra.mxu0 0
        %342 = vmatprep.subr.bf16.mxu0 0
        %343 = vmatpush2.bf16.msra.mxu0 0
        %344 = vmatprep.subr.bf16.mxu0 0
        %345 = vmatpush2.bf16.msra.mxu0 0
        %346 = vmatprep.subr.bf16.mxu0 0
        %347 = vmatpush2.bf16.msra.mxu0 0
        %348 = vmatprep.subr.bf16.mxu0 0
        %349 = vmatpush2.bf16.msra.mxu0 0
        %350 = vmatprep.subr.bf16.mxu0 0
        %351 = vmatpush2.bf16.msra.mxu0 0
        %352 = vmatprep.subr.bf16.mxu0 0
        %353 = vmatpush2.bf16.msra.mxu0 0
        %354 = vmatprep.mubr.bf16.mxu0 0
        %355 = vmatmul.mubr.bf16.gmra.mxu0 %v310
        %v356 = vpop.f32.mrf.mxu0
        %v357 = vadd.f32 %v266, %v356
        %v358 = vpop.f32.mrf.mxu0
        %v359 = vadd.f32 %v266, %v358
        %v360 = vpop.f32.mrf.mxu0
        %v361 = vpop.f32.mrf.mxu0
        %362 = vdwg.mxu0
        %363 = vmatprep.subr.bf16.mxu0 0
        %364 = vmatpush1.bf16.msra.mxu0 0
        %365 = vmatprep.subr.bf16.mxu0 0
        %366 = vmatpush1.bf16.msra.mxu0 0
        %367 = vmatprep.subr.bf16.mxu0 0
        %368 = vmatpush1.bf16.msra.mxu0 0
        %369 = vmatprep.subr.bf16.mxu0 0
        %370 = vmatpush1.bf16.msra.mxu0 0
        %371 = vmatprep.subr.bf16.mxu0 0
        %372 = vmatpush1.bf16.msra.mxu0 0
        %373 = vmatprep.subr.bf16.mxu0 0
        %374 = vmatpush1.bf16.msra.mxu0 %v320
        %375 = vmatprep.subr.bf16.mxu0 0
        %376 = vmatpush1.bf16.msra.mxu0 %v298
        %377 = vmatprep.subr.bf16.mxu0 0
        %378 = vmatpush1.bf16.msra.mxu0 %v295
        %379 = vmatprep.subr.bf16.mxu0 0
        %380 = vmatpush2.bf16.msra.mxu0 0
        %381 = vmatprep.subr.bf16.mxu0 0
        %382 = vmatpush2.bf16.msra.mxu0 0
        %383 = vmatprep.subr.bf16.mxu0 0
        %384 = vmatpush2.bf16.msra.mxu0 0
        %385 = vmatprep.subr.bf16.mxu0 0
        %386 = vmatpush2.bf16.msra.mxu0 0
        %387 = vmatprep.subr.bf16.mxu0 0
        %388 = vmatpush2.bf16.msra.mxu0 0
        %389 = vmatprep.subr.bf16.mxu0 0
        %390 = vmatpush2.bf16.msra.mxu0 0
        %391 = vmatprep.subr.bf16.mxu0 0
        %392 = vmatpush2.bf16.msra.mxu0 0
        %393 = vmatprep.subr.bf16.mxu0 0
        %394 = vmatpush2.bf16.msra.mxu0 0
        %395 = vmatprep.mubr.bf16.mxu0 0
        %396 = vmatmul.mubr.bf16.gmra.mxu0 %v310
        %v397 = vpop.f32.mrf.mxu0
        %v398 = vadd.f32 %v266, %v397
        %v399 = vpop.f32.mrf.mxu0
        %v400 = vpop.f32.mrf.mxu0
        %v401 = vpop.f32.mrf.mxu0
        %402 = vdwg.mxu0
        %v403 = vmax.f32 %v357, 0.0
        %v404 = vmax.f32 %v359, 0.0
        %v405 = vmax.f32 %v398, 0.0
        %v406 = vld [vmem:[%s5] sm:$0x7]
        %v408 = vlaneseq
        %v409 = vshrl.u32 %v408, 7
        %v410 = vsub.s32 0, %v409
        %v411 = vrot.slane %v406, %v410
        %v412 = vlaneseq
        %v413 = vshrl.u32 %v412, 7
        %v414 = vsub.s32 1, %v413
        %v415 = vrot.slane %v406, %v414
        %v416 = vlaneseq
        %v417 = vshrl.u32 %v416, 7
        %v418 = vsub.s32 2, %v417
        %v419 = vrot.slane %v406, %v418
        %v423 = vmul.f32 %v403, %v411
        %v424 = vmul.f32 %v404, %v415
        %v425 = vmul.f32 %v405, %v419
        %v426 = vpack.c.bf16 %v423, %v423
        %v427 = vpack.c.bf16 %v424, %v424
        %v428 = vpack.c.bf16 %v425, %v425
        %vm429 = vcmask 150528
        %430 = vst.msk [vmem:[#allocation2] sm:$0xf] %vm429, 0
        %vm431 = vcmask 568728
        %432 = vst.msk [vmem:[#allocation2 + $0x8] sm:$0xf] %vm431, 0
        %v436 = vunpack.c.l.b16 %v426
        %v437 = vunpack.c.l.b16 %v427
        %v438 = vunpack.c.l.b16 %v428
        %v439 = vpack.c.b16 %v437, %v436
        %v440 = vpack.c.b16 %v438, %v438
        %441 = vrot.lane.b32.xlu0 %v439, 19
        %v442 = vpop.permute.xlu0 %441
        %443 = vrot.lane.b32.xlu0 %v440, 19
        %v444 = vpop.permute.xlu0 %443
        %v445 = vrot.slane %v442, 4
        %vm446 = vcmask 154624
        %v447 = vsel %vm446, %v445, %v442
        %v448 = vsel %vm446, %v445, %v444
        %vm451 = vcmask 1043608
        %vm452 = vcmask 1047556
        %vm453 = vmor %vm452, %vm451
        %454 = vst.msk [vmem:[#allocation2] sm:$0xff] %vm453, %v447
        %vm455 = vcmask 412672
        %456 = vst.msk [vmem:[#allocation2 + $0x8] sm:$0xf] %vm455, %v448
        %v457 = vld [vmem:[#allocation2] sm:$0xff]
        %v458 = vld [vmem:[#allocation2 + $0x8] sm:$0xf]
        %459 = vst [vmem:[#allocation3] sm:$0xff] %v457
        %vm460 = vcmask 257024
        %461 = vst.msk [vmem:[#allocation3 + $0x8] sm:$0xf] %vm460, %v458
        %v462 = vld [vmem:[#allocation2] sm:$0xff]
        %v463 = vld [vmem:[#allocation2 + $0x8] sm:$0xf]
        %466 = vrot.lane.b32.xlu0 %v462, 127
        %v467 = vpop.permute.xlu0 %466
        %468 = vrot.lane.b32.xlu0 %v463, 127
        %v469 = vpop.permute.xlu0 %468
        %v470 = vrot.slane %v467, 4
        %v471 = vrot.slane %v469, 4
        %vm472 = vcmask 1043456
        %v473 = vsel %vm472, %v470, %v471
        %vm474 = vcmask 1039360
        %v475 = vsel %vm474, %v467, %v473
        %478 = vst [vmem:[#allocation3 + $0xc] sm:$0xff] %v475
        %479 = vst.msk [vmem:[#allocation3 + $0x14] sm:$0xf] %vm460, %v469
        %v480 = vld [vmem:[#allocation2] sm:$0xff]
        %v481 = vld [vmem:[#allocation2 + $0x8] sm:$0xf]
        %484 = vrot.lane.b32.xlu0 %v480, 126
        %v485 = vpop.permute.xlu0 %484
        %486 = vrot.lane.b32.xlu0 %v481, 126
        %v487 = vpop.permute.xlu0 %486
        %v488 = vrot.slane %v485, 4
        %v489 = vrot.slane %v487, 4
        %v490 = vsel %vm472, %v488, %v489
        %vm491 = vcmask 1031168
        %v492 = vsel %vm491, %v485, %v490
        %495 = vst [vmem:[#allocation3 + $0x18] sm:$0xff] %v492
        %496 = vst.msk [vmem:[#allocation3 + $0x20] sm:$0xf] %vm460, %v487
        %v497 = vld [vmem:[#allocation2] sm:$0xff]
        %v498 = vld [vmem:[#allocation2 + $0x8] sm:$0xf]
        %501 = vrot.lane.b32.xlu0 %v497, 110
        %v502 = vpop.permute.xlu0 %501
        %503 = vrot.lane.b32.xlu0 %v498, 110
        %v504 = vpop.permute.xlu0 %503
        %v505 = vrot.slane %v502, 4
        %v506 = vrot.slane %v504, 4
        %v507 = vsel %vm472, %v505, %v506
        %vm508 = vcmask 900096
        %v509 = vsel %vm508, %v502, %v507
        %512 = vst [vmem:[#allocation3 + $0x24] sm:$0xff] %v509
        %513 = vst.msk [vmem:[#allocation3 + $0x2c] sm:$0xf] %vm460, %v504
        %v514 = vld [vmem:[#allocation2] sm:$0xff]
        %v515 = vld [vmem:[#allocation2 + $0x8] sm:$0xf]
        %518 = vrot.lane.b32.xlu0 %v514, 109
        %v519 = vpop.permute.xlu0 %518
        %520 = vrot.lane.b32.xlu0 %v515, 109
        %v521 = vpop.permute.xlu0 %520
        %v522 = vrot.slane %v519, 4
        %v523 = vrot.slane %v521, 4
        %v524 = vsel %vm472, %v522, %v523
        %vm525 = vcmask 891904
        %v526 = vsel %vm525, %v519, %v524
        %529 = vst [vmem:[#allocation3 + $0x30] sm:$0xff] %v526
        %530 = vst.msk [vmem:[#allocation3 + $0x38] sm:$0xf] %vm460, %v521
        %v531 = vld [vmem:[#allocation2] sm:$0xff]
        %v532 = vld [vmem:[#allocation2 + $0x8] sm:$0xf]
        %535 = vrot.lane.b32.xlu0 %v531, 108
        %v536 = vpop.permute.xlu0 %535
        %537 = vrot.lane.b32.xlu0 %v532, 108
        %v538 = vpop.permute.xlu0 %537
        %v539 = vrot.slane %v536, 4
        %v540 = vrot.slane %v538, 4
        %v541 = vsel %vm472, %v539, %v540
        %vm542 = vcmask 883712
        %v543 = vsel %vm542, %v536, %v541
        %546 = vst [vmem:[#allocation3 + $0x3c] sm:$0xff] %v543
        %547 = vst.msk [vmem:[#allocation3 + $0x44] sm:$0xf] %vm460, %v538
        %v548 = vld [vmem:[#allocation2] sm:$0xff]
        %v549 = vld [vmem:[#allocation2 + $0x8] sm:$0xf]
        %552 = vrot.lane.b32.xlu0 %v548, 92
        %v553 = vpop.permute.xlu0 %552
        %554 = vrot.lane.b32.xlu0 %v549, 92
        %v555 = vpop.permute.xlu0 %554
        %v556 = vrot.slane %v553, 4
        %v557 = vrot.slane %v555, 4
        %v558 = vsel %vm472, %v556, %v557
        %vm559 = vcmask 752640
        %v560 = vsel %vm559, %v553, %v558
        %563 = vst [vmem:[#allocation3 + $0x48] sm:$0xff] %v560
        %564 = vst.msk [vmem:[#allocation3 + $0x50] sm:$0xf] %vm460, %v555
        %v565 = vld [vmem:[#allocation2] sm:$0xff]
        %v566 = vld [vmem:[#allocation2 + $0x8] sm:$0xf]
        %569 = vrot.lane.b32.xlu0 %v565, 91
        %v570 = vpop.permute.xlu0 %569
        %571 = vrot.lane.b32.xlu0 %v566, 91
        %v572 = vpop.permute.xlu0 %571
        %v573 = vrot.slane %v570, 4
        %v574 = vrot.slane %v572, 4
        %v575 = vsel %vm472, %v573, %v574
        %vm576 = vcmask 744448
        %v577 = vsel %vm576, %v570, %v575
        %580 = vst [vmem:[#allocation3 + $0x54] sm:$0xff] %v577
        %581 = vst.msk [vmem:[#allocation3 + $0x5c] sm:$0xf] %vm460, %v572
        %v582 = vld [vmem:[#allocation2] sm:$0xff]
        %v583 = vld [vmem:[#allocation2 + $0x8] sm:$0xf]
        %586 = vrot.lane.b32.xlu0 %v582, 90
        %v587 = vpop.permute.xlu0 %586
        %588 = vrot.lane.b32.xlu0 %v583, 90
        %v589 = vpop.permute.xlu0 %588
        %v590 = vrot.slane %v587, 4
        %v591 = vrot.slane %v589, 4
        %v592 = vsel %vm472, %v590, %v591
        %vm593 = vcmask 736256
        %v594 = vsel %vm593, %v587, %v592
        %597 = vst [vmem:[#allocation3 + $0x60] sm:$0xff] %v594
        %598 = vst.msk [vmem:[#allocation3 + $0x68] sm:$0xf] %vm460, %v589
        %v599 = vld [vmem:[%s3] sm:$0xf]
        %v600 = vld [vmem:[#allocation3] sm:$0xff]
        %v601 = vld [vmem:[#allocation3 + $0x8] sm:$0xf]
        %v602 = vld [vmem:[#allocation3 + $0xc] sm:$0xff]
        %v603 = vld [vmem:[#allocation3 + $0x14] sm:$0xf]
        %v604 = vld [vmem:[#allocation3 + $0x18] sm:$0xff]
        %v605 = vld [vmem:[#allocation3 + $0x20] sm:$0xf]
        %v606 = vld [vmem:[#allocation3 + $0x24] sm:$0xff]
        %v607 = vld [vmem:[#allocation3 + $0x2c] sm:$0xf]
        %v608 = vld [vmem:[#allocation3 + $0x30] sm:$0xff]
        %v609 = vld [vmem:[#allocation3 + $0x38] sm:$0xf]
        %v610 = vld [vmem:[#allocation3 + $0x3c] sm:$0xff]
        %v611 = vld [vmem:[#allocation3 + $0x44] sm:$0xf]
        %v612 = vld [vmem:[#allocation3 + $0x48] sm:$0xff]
        %v613 = vld [vmem:[#allocation3 + $0x50] sm:$0xf]
        %v614 = vld [vmem:[#allocation3 + $0x54] sm:$0xff]
        %v615 = vld [vmem:[#allocation3 + $0x5c] sm:$0xf]
        %v616 = vld [vmem:[#allocation3 + $0x60] sm:$0xff]
        %v617 = vld [vmem:[#allocation3 + $0x68] sm:$0xf]
        %v618 = vld [vmem:[%s4] sm:$0xff]
        %620 = vset.pattern.permute.xlu0 0
        %621 = vperm.xlu0 %620, %v618
        %v622 = vpop.permute.xlu0 %621
        %v642 = vunpack.c.l.b16 %v600
        %v643 = vunpack.c.h.b16 %v600
        %v644 = vunpack.c.l.b16 %v601
        %v645 = vunpack.c.l.b16 %v602
        %v646 = vunpack.c.h.b16 %v602
        %v647 = vunpack.c.l.b16 %v603
        %v648 = vunpack.c.l.b16 %v604
        %v649 = vunpack.c.h.b16 %v604
        %v650 = vunpack.c.l.b16 %v605
        %v651 = vunpack.c.l.b16 %v606
        %v652 = vunpack.c.h.b16 %v606
        %v653 = vunpack.c.l.b16 %v607
        %v654 = vunpack.c.l.b16 %v608
        %v655 = vunpack.c.h.b16 %v608
        %v656 = vunpack.c.l.b16 %v609
        %v657 = vunpack.c.l.b16 %v610
        %v658 = vunpack.c.h.b16 %v610
        %v659 = vunpack.c.l.b16 %v611
        %v660 = vunpack.c.l.b16 %v612
        %v661 = vunpack.c.h.b16 %v612
        %v662 = vunpack.c.l.b16 %v613
        %v663 = vunpack.c.l.b16 %v614
        %v664 = vunpack.c.h.b16 %v614
        %v665 = vunpack.c.l.b16 %v615
        %v666 = vunpack.c.l.b16 %v616
        %v667 = vunpack.c.h.b16 %v616
        %v668 = vunpack.c.l.b16 %v617
        %v669 = vpack.c.b16 %v645, %v642
        %v670 = vpack.c.b16 %v646, %v643
        %v671 = vpack.c.b16 %v647, %v644
        %v672 = vpack.c.b16 %v651, %v648
        %v673 = vpack.c.b16 %v652, %v649
        %v674 = vpack.c.b16 %v653, %v650
        %v675 = vpack.c.b16 %v657, %v654
        %v676 = vpack.c.b16 %v658, %v655
        %v677 = vpack.c.b16 %v659, %v656
        %v678 = vpack.c.b16 %v663, %v660
        %v679 = vpack.c.b16 %v664, %v661
        %v680 = vpack.c.b16 %v665, %v662
        %v681 = vpack.c.b16 %v666, %v666
        %v682 = vpack.c.b16 %v667, %v667
        %v683 = vpack.c.b16 %v668, %v668
        %vm696 = vcmask 588800
        %v698 = vsel %vm696, %v599, 0
        %vm700 = vcmask 1043456
        %v702 = vsel %vm700, %v681, 0
        %v705 = vsel %vm700, %v682, 0
        %v708 = vsel %vm700, %v683, 0
        %710 = vmatprep.subr.bf16.mxu0 0
        %711 = vmatpush1.bf16.msra.mxu0 0
        %712 = vmatprep.subr.bf16.mxu0 0
        %713 = vmatpush1.bf16.msra.mxu0 0
        %714 = vmatprep.subr.bf16.mxu0 0
        %715 = vmatpush1.bf16.msra.mxu0 0
        %716 = vmatprep.subr.bf16.mxu0 %v705
        %717 = vmatpush1.bf16.msra.mxu0 %v702
        %718 = vmatprep.subr.bf16.mxu0 %v679
        %719 = vmatpush1.bf16.msra.mxu0 %v678
        %720 = vmatprep.subr.bf16.mxu0 %v676
        %721 = vmatpush1.bf16.msra.mxu0 %v675
        %722 = vmatprep.subr.bf16.mxu0 %v673
        %723 = vmatpush1.bf16.msra.mxu0 %v672
        %724 = vmatprep.subr.bf16.mxu0 %v670
        %725 = vmatpush1.bf16.msra.mxu0 %v669
        %726 = vmatprep.subr.bf16.mxu0 0
        %727 = vmatpush2.bf16.msra.mxu0 0
        %728 = vmatprep.subr.bf16.mxu0 0
        %729 = vmatpush2.bf16.msra.mxu0 0
        %730 = vmatprep.subr.bf16.mxu0 0
        %731 = vmatpush2.bf16.msra.mxu0 0
        %732 = vmatprep.subr.bf16.mxu0 0
        %733 = vmatpush2.bf16.msra.mxu0 0
        %734 = vmatprep.subr.bf16.mxu0 0
        %735 = vmatpush2.bf16.msra.mxu0 0
        %736 = vmatprep.subr.bf16.mxu0 0
        %737 = vmatpush2.bf16.msra.mxu0 0
        %738 = vmatprep.subr.bf16.mxu0 0
        %739 = vmatpush2.bf16.msra.mxu0 0
        %740 = vmatprep.subr.bf16.mxu0 0
        %741 = vmatpush2.bf16.msra.mxu0 0
        %742 = vmatprep.mubr.bf16.mxu0 0
        %743 = vmatmul.mubr.bf16.gmra.mxu0 %v698
        %v744 = vpop.f32.mrf.mxu0
        %v745 = vadd.f32 %v622, %v744
        %v746 = vpop.f32.mrf.mxu0
        %v747 = vadd.f32 %v622, %v746
        %v748 = vpop.f32.mrf.mxu0
        %v749 = vpop.f32.mrf.mxu0
        %750 = vdwg.mxu0
        %751 = vmatprep.subr.bf16.mxu0 0
        %752 = vmatpush1.bf16.msra.mxu0 0
        %753 = vmatprep.subr.bf16.mxu0 0
        %754 = vmatpush1.bf16.msra.mxu0 0
        %755 = vmatprep.subr.bf16.mxu0 0
        %756 = vmatpush1.bf16.msra.mxu0 0
        %757 = vmatprep.subr.bf16.mxu0 0
        %758 = vmatpush1.bf16.msra.mxu0 %v708
        %759 = vmatprep.subr.bf16.mxu0 0
        %760 = vmatpush1.bf16.msra.mxu0 %v680
        %761 = vmatprep.subr.bf16.mxu0 0
        %762 = vmatpush1.bf16.msra.mxu0 %v677
        %763 = vmatprep.subr.bf16.mxu0 0
        %764 = vmatpush1.bf16.msra.mxu0 %v674
        %765 = vmatprep.subr.bf16.mxu0 0
        %766 = vmatpush1.bf16.msra.mxu0 %v671
        %767 = vmatprep.subr.bf16.mxu0 0
        %768 = vmatpush2.bf16.msra.mxu0 0
        %769 = vmatprep.subr.bf16.mxu0 0
        %770 = vmatpush2.bf16.msra.mxu0 0
        %771 = vmatprep.subr.bf16.mxu0 0
        %772 = vmatpush2.bf16.msra.mxu0 0
        %773 = vmatprep.subr.bf16.mxu0 0
        %774 = vmatpush2.bf16.msra.mxu0 0
        %775 = vmatprep.subr.bf16.mxu0 0
        %776 = vmatpush2.bf16.msra.mxu0 0
        %777 = vmatprep.subr.bf16.mxu0 0
        %778 = vmatpush2.bf16.msra.mxu0 0
        %779 = vmatprep.subr.bf16.mxu0 0
        %780 = vmatpush2.bf16.msra.mxu0 0
        %781 = vmatprep.subr.bf16.mxu0 0
        %782 = vmatpush2.bf16.msra.mxu0 0
        %783 = vmatprep.mubr.bf16.mxu0 0
        %784 = vmatmul.mubr.bf16.gmra.mxu0 %v698
        %v785 = vpop.f32.mrf.mxu0
        %v786 = vadd.f32 %v622, %v785
        %v787 = vpop.f32.mrf.mxu0
        %v788 = vpop.f32.mrf.mxu0
        %v789 = vpop.f32.mrf.mxu0
        %790 = vdwg.mxu0
        %v791 = vmax.f32 %v745, 0.0
        %v792 = vmax.f32 %v747, 0.0
        %v793 = vmax.f32 %v786, 0.0
        %vm794 = vcmask 417024
        %795 = vst.msk [vmem:[#allocation4 + $0x10] sm:$0xff] %vm794, 0.0
        %796 = vst [vmem:[#allocation4] sm:$0xff] %v791
        %797 = vst [vmem:[#allocation4 + $0x8] sm:$0xff] %v792
        %vm798 = vcmask 261120
        %799 = vst.msk [vmem:[#allocation4 + $0x10] sm:$0xff] %vm798, %v793
        %v800 = vld [vmem:[#allocation4] sm:$0xff]
        %v801 = vld [vmem:[#allocation4 + $0x8] sm:$0xff]
        %v802 = vld [vmem:[#allocation4 + $0x10] sm:$0xff]
        %806 = vrot.lane.b32.xlu0 %v800, 127
        %v807 = vpop.permute.xlu0 %806
        %808 = vrot.lane.b32.xlu0 %v801, 127
        %v809 = vpop.permute.xlu0 %808
        %810 = vrot.lane.b32.xlu0 %v802, 127
        %v811 = vpop.permute.xlu0 %810
        %vm812 = vcmask 1039360
        %v813 = vsel %vm812, %v807, %v809
        %v814 = vsel %vm812, %v809, %v811
        %v818 = vmax.f32 %v791, %v813
        %v819 = vmax.f32 %v792, %v814
        %v820 = vmax.f32 %v793, %v811
        %v821 = vmax.f32 %v800, %v813
        %v822 = vmax.f32 %v801, %v814
        %v823 = vmax.f32 %v802, %v811
        %827 = vrot.lane.b32.xlu0 %v821, 110
        %v828 = vpop.permute.xlu0 %827
        %829 = vrot.lane.b32.xlu0 %v822, 110
        %v830 = vpop.permute.xlu0 %829
        %831 = vrot.lane.b32.xlu0 %v823, 110
        %v832 = vpop.permute.xlu0 %831
        %vm833 = vcmask 900096
        %v834 = vsel %vm833, %v828, %v830
        %v835 = vsel %vm833, %v830, %v832
        %v839 = vmax.f32 %v818, %v834
        %v840 = vmax.f32 %v819, %v835
        %v841 = vmax.f32 %v820, %v832
        %v842 = vxor.u32 %v839, 2147483648
        %v843 = vxor.u32 %v840, 2147483648
        %v844 = vxor.u32 %v841, 2147483648
        %v845 = vmul.f32 %v842, 1.442695
        %v846 = vpow.pop %v845
        %v847 = vmul.f32 %v843, 1.442695
        %v848 = vpow.pop %v847
        %v849 = vmul.f32 %v844, 1.442695
        %v850 = vpow.pop %v849
        %v851 = vadd.f32 %v846, 1.0
        %v852 = vadd.f32 %v848, 1.0
        %v853 = vadd.f32 %v850, 1.0
        %v854 = vrcp.pop %v851
        %v855 = vmul.f32 1.0, %v854
        %v856 = vrcp.pop %v852
        %v857 = vmul.f32 1.0, %v856
        %v858 = vrcp.pop %v853
        %v859 = vmul.f32 1.0, %v858
        %860 = vst [vmem:[%s244] sm:$0xff] %v855
        %861 = vst [vmem:[%s244 + $0x8] sm:$0xff] %v857
        %862 = vst.msk [vmem:[%s244 + $0x10] sm:$0xff] %vm798, %v859
        %s863 = sand.u32 %s159, 1
        %s864 = scalar_lea.sflag [#allocation6], %s863
        %s865 = sand.u32 %s159, 1
        %s866 = smul.addr %s865, 24
        %s867 = scalar_lea.vmem [#allocation5], %s866
        // Predicated region
        $region45: #{tpu_custom_call.1} parent=43 // pred_check
          %p868 = pneg %p169
        $region46: #{tpu_custom_call.1} parent=43 // pred_check_branch
          %870 = sbr.rel (%p868) target = $region48
        $region47: #{tpu_custom_call.1} parent=43 // pred_region
          %s872 = ssub.s32 384, 384
          %873 = vsyncadd %s864, %s872
          %s874 = smul.addr %s20, 3
          %s875 = smul.addr %s874, 128
          %s876 = scalar_lea.hbm %s6, %s875
          %s878 = sshll.u32 %s867, 4
          %s879 = int_to_ptr.vmem [resolvable:$true] %s878
          %881 = dma.vmem_to_hbm [thread:$0]  %s879, 384, %s876, %s864
        $region48: #{tpu_custom_call.1} parent=43 // pred_fallthru
          _
      $region44: #{tpu_custom_call.1} parent=5 // pred_fallthru
        _
      %p882 = scmp.le.s32.totalorder 2, %s15
      // Predicated region
      $region49: #{tpu_custom_call.1} parent=5 // pred_check
        %p883 = pneg %p882
      $region50: #{tpu_custom_call.1} parent=5 // pred_check_branch
        %885 = sbr.rel (%p883) target = $region52
      $region51: #{tpu_custom_call.1} parent=5 // pred_region
        %s886 = ssub.s32 %s15, 2
        // Predicated region
        $region53: #{tpu_custom_call.1} parent=51 // pred_check
          %p887 = pneg %p175
        $region54: #{tpu_custom_call.1} parent=51 // pred_check_branch
          %889 = sbr.rel (%p887) target = $region56
        $region55: #{tpu_custom_call.1} parent=51 // pred_region
          %s890 = sand.u32 %s160, 1
          %s891 = scalar_lea.sflag [#allocation6], %s890
          %s892 = sand.u32 %s160, 1
          %s893 = smul.addr %s892, 24
          %s894 = scalar_lea.vmem [#allocation5], %s893
          %895 = dma.done %s891, 384
        $region56: #{tpu_custom_call.1} parent=51 // pred_fallthru
          _
      $region52: #{tpu_custom_call.1} parent=5 // pred_fallthru
        _
    $region6: #{tpu_custom_call.1} parent=1 // loop_footer
      %s19 = sadd.s32 1, %s15
    $region7: #{tpu_custom_call.1} parent=1 // loop_footer_branch
      %14 = sbr.rel target = $region3
    $region8: #{tpu_custom_call.1} parent=1 // loop_exit
      _
    %896 = vsyncpa [#allocation6], 1
    %s897 = scalar_lea.sflag [#allocation6], 1
    %898 = vsyncpa %s897, 1

</llo_original>
